<compile_context>
chip_gen: v5e
topology: v5e:2x2
jax: 0.10.0
libtpu: 0.0.40
codegen_flags: <defaults>
</compile_context>

<pallas_src>
import functools

import jax
import jax.numpy as jnp
from jax import lax
from jax.experimental import pallas as pl
from jax.experimental.pallas import tpu as pltpu


def _round_up(n, m):
    return ((n + m - 1) // m) * m


def _vmem_capacity_bytes():
    """Per-core VMEM capacity; conservative v7x fallback if the query fails."""
    try:
        info = pltpu.get_tpu_info()
        cap = getattr(info, "vmem_capacity_bytes", None)
        if cap:
            return int(cap)
    except Exception:
        pass
    return 64 * 1024 * 1024  # v7x per-TensorCore VMEM (smallest of v5e/v6e/v7x)


def _vmem_need_bytes(tm, tn, tk):
    """Double-buffered tile footprint for one grid step."""
    return (
        2 * tm * tk * 4      # x tile, f32, double-buffered
        + 2 * tn * tk * 2    # w tile, bf16, double-buffered
        + 2 * 1 * tn * 4     # bias tile, f32
        + 2 * tm * tn * 4    # output tile, f32 (accumulator)
    )


def _select_tiles(B, in_size, out_size, vmem_cap):
    """Pick (tm, tn, tk) and padded extents (Bp, Kp, Np)."""
    # Minimal padded extents dictated by (sublane, lane) tiling.
    Bp = _round_up(max(B, 8), 8)
    Kp = _round_up(max(in_size, 128), 128)
    Np = _round_up(max(out_size, 128), 128)

    # Leave headroom for Mosaic's own scratch / pipelining state.
    budget = int(min(vmem_cap, 112 * 1024 * 1024) * 0.7)

    tm_cands = [t for t in (512, 256, 128, 64, 32, 16, 8) if t <= Bp] or [Bp]

    best = None
    # Prefer a weight-resident tiling: with tn=Np, tk=Kp the weight BlockSpec
    # index is constant across the grid, so the (bf16) weight is streamed from
    # HBM exactly once per call regardless of the batch size.
    for tm in tm_cands:
        if _vmem_need_bytes(tm, Np, Kp) <= budget:
            best = (tm, Np, Kp)
            break
    if best is None:
        # Fall back to large-but-bounded tiles (amortize per-grid-step overhead).
        for tm in tm_cands:
            found = False
            for tn in (512, 256, 128):
                if tn > Np:
                    continue
                for tk in (2048, 1024, 512, 256, 128):
                    if tk > Kp:
                        continue
                    if _vmem_need_bytes(tm, tn, tk) <= budget:
                        best = (tm, tn, tk)
                        found = True
                        break
                if found:
                    break
            if found:
                break
    if best is None:
        best = (8, 128, 128)

    tm, tn, tk = best

    # Re-pad so the chosen tiles divide the padded extents evenly.
    Bp = _round_up(Bp, tm)
    Kp = _round_up(Kp, tk)
    Np = _round_up(Np, tn)

    # v7x megacore: expose >=2 blocks along a parallel axis when shapes allow
    # (tm stays a multiple of 8, tn stays a multiple of 128).
    if (Bp // tm) * (Np // tn) == 1:
        if tm >= 16 and (tm // 2) % 8 == 0:
            tm //= 2
        elif tn >= 256 and (tn // 2) % 128 == 0:
            tn //= 2

    return tm, tn, tk, Bp, Kp, Np


def _make_kernel(activate):
    def kernel(scale_ref, x_ref, w_ref, b_ref, o_ref):
        k = pl.program_id(2)

        @pl.when(k == 0)
        def _():
            o_ref[...] = jnp.zeros_like(o_ref)

        # x tile (tm, tk) f32 -> bf16 on the VPU (hidden under MXU work);
        # weight tile (tn, tk) is bf16 in its native nn.Linear (out, in)
        # layout.  Contract both on axis 1 -> (tm, tn), f32 accumulation, so
        # the transpose happens on-chip rather than as a wrapper HBM pass.
        o_ref[...] += lax.dot_general(
            x_ref[...].astype(jnp.bfloat16),
            w_ref[...],
            dimension_numbers=(((1,), (1,)), ((), ())),
            preferred_element_type=jnp.float32,
        )

        # Epilogue only on the final reduction step: weight-norm scale, bias,
        # activation, written in place into the resident output tile.
        @pl.when(k == pl.num_programs(2) - 1)
        def _():
            y = o_ref[...] * scale_ref[0, 0] + b_ref[...]
            if activate == "relu":
                y = jnp.maximum(y, 0.0)
            elif activate == "sigmoid":
                y = jax.nn.sigmoid(y)
            elif activate == "tanh":
                y = jnp.tanh(y)
            o_ref[...] = y

    return kernel


@functools.partial(jax.jit, static_argnames=("activate",))
def fcnet_forward(x, w, g, b, *, activate="relu"):
    """FCNet forward (eval mode / drop=0).

    x: (B, in_size) f32
    w: (out_size, in_size) f32   -- weight_norm `v` tensor (nn.Linear layout)
    g: scalar f32                -- weight_norm `g` parameter (dim=None)
    b: (out_size,) f32           -- bias
    """
    B, in_size = x.shape
    out_size = w.shape[0]
    activate = activate.lower() if activate is not None else None

    # weight_norm(dim=None): one scalar scale for the entire weight, computed
    # once here so the in-kernel body is a plain tiled matmul.
    scale = g / jnp.sqrt(jnp.sum(w.astype(jnp.float32) ** 2))
    scale = scale.reshape(1, 1).astype(jnp.float32)

    vmem_cap = _vmem_capacity_bytes()
    tm, tn, tk, Bp, Kp, Np = _select_tiles(B, in_size, out_size, vmem_cap)

    # x stays f32 (cast to bf16 inside the kernel); pad only when needed.
    x_in = x.astype(jnp.float32)
    if (B, in_size) != (Bp, Kp):
        x_in = jnp.zeros((Bp, Kp), jnp.float32).at[:B, :in_size].set(x_in)

    # Weight: native (out, in) layout, bf16, padded only when needed.
    w_in = w.astype(jnp.bfloat16)
    if (out_size, in_size) != (Np, Kp):
        w_in = jnp.zeros((Np, Kp), jnp.bfloat16).at[:out_size, :in_size].set(w_in)

    b_in = b.reshape(1, out_size).astype(jnp.float32)
    if out_size != Np:
        b_in = jnp.zeros((1, Np), jnp.float32).at[:, :out_size].set(b_in)

    grid = (Bp // tm, Np // tn, Kp // tk)

    need = _vmem_need_bytes(tm, tn, tk)
    vmem_limit = min(max(2 * need, 32 * 1024 * 1024), int(vmem_cap * 0.85))

    out = pl.pallas_call(
        _make_kernel(activate),
        out_shape=jax.ShapeDtypeStruct((Bp, Np), jnp.float32),
        grid_spec=pltpu.PrefetchScalarGridSpec(
            num_scalar_prefetch=0,
            grid=grid,
            in_specs=[
                pl.BlockSpec(memory_space=pltpu.MemorySpace.SMEM),   # scale (1,1)
                pl.BlockSpec((tm, tk), lambda i, j, k: (i, k)),      # x tile (f32)
                pl.BlockSpec((tn, tk), lambda i, j, k: (j, k)),      # w tile (bf16, native layout)
                pl.BlockSpec((1, tn), lambda i, j, k: (0, j)),       # bias tile
            ],
            out_specs=pl.BlockSpec((tm, tn), lambda i, j, k: (i, j)),
        ),
        compiler_params=pltpu.CompilerParams(
            dimension_semantics=("parallel", "parallel", "arbitrary"),
            vmem_limit_bytes=vmem_limit,
        ),
    )(scale, x_in, w_in, b_in)

    return out[:B, :out_size]


if __name__ == "__main__":
    # Small shapes consistent with FCNet(in_size=32, out_size=64, activate='relu')
    B, in_size, out_size = 8, 32, 64

    key = jax.random.PRNGKey(0)
    kx, kw, kb = jax.random.split(key, 3)

    x = jax.random.normal(kx, (B, in_size), dtype=jnp.float32)
    # nn.Linear weight layout is (out, in); weight_norm stores v = weight.
    w = jax.random.normal(kw, (out_size, in_size), dtype=jnp.float32) * 0.1
    b = jax.random.normal(kb, (out_size,), dtype=jnp.float32) * 0.1
    # weight_norm g (dim=None). Non-trivial value so the scale path is exercised
    # (PyTorch initialises g = ||w||_F, which would give scale == 1).
    g = jnp.float32(1.7)

    out = fcnet_forward(x, w, g, b, activate="relu")
    out = jax.block_until_ready(out)
    assert out.shape == (B, out_size)

    # Reference 1: same math in plain JAX with the kernel's MXU dtypes
    # (bf16 operands, f32 accumulation) -> tight tolerance.
    scale = g / jnp.sqrt(jnp.sum(w * w))
    xb = x.astype(jnp.bfloat16)
    wb = w.astype(jnp.bfloat16)
    ref_bf16 = jnp.maximum(
        jnp.dot(xb, wb.T, preferred_element_type=jnp.float32) * scale + b[None, :],
        0.0,
    )
    assert jnp.allclose(out, ref_bf16, atol=1e-3, rtol=1e-3), (
        float(jnp.max(jnp.abs(out - ref_bf16))))

    # Reference 2: full-f32 forward pass with a bf16-appropriate tolerance.
    ref_f32 = jnp.maximum(x @ w.T * scale + b[None, :], 0.0)
    assert jnp.allclose(out, ref_f32, atol=5e-2, rtol=5e-2), (
        float(jnp.max(jnp.abs(out - ref_f32))))

    print("KERNEL_OK")
</pallas_src>

<mosaic_0001>
module attributes {stable_mosaic.version = 11 : i64} {
  func.func @kernel(%arg0: i32, %arg1: i32, %arg2: i32, %arg3: memref<1x1xf32, #tpu.memory_space<smem>>, %arg4: memref<8x128xf32, #tpu.memory_space<vmem>>, %arg5: memref<128x128xbf16, #tpu.memory_space<vmem>>, %arg6: memref<1x128xf32, #tpu.memory_space<vmem>>, %arg7: memref<8x128xf32, #tpu.memory_space<vmem>>) attributes {dimension_semantics = [#tpu.dimension_semantics<parallel>, #tpu.dimension_semantics<parallel>, #tpu.dimension_semantics<arbitrary>], iteration_bounds = array<i64: 1, 1, 1>, scalar_prefetch = 0 : i64, scratch_operands = 0 : i64, tpu.core_type = #tpu.core_type<tc>, window_params = [{transform_indices = @transform_0, window_bounds = array<i64: 1, 1>}, {transform_indices = @transform_1, window_bounds = array<i64: 8, 128>}, {transform_indices = @transform_2, window_bounds = array<i64: 128, 128>}, {transform_indices = @transform_3, window_bounds = array<i64: 1, 128>}, {transform_indices = @transform_4, window_bounds = array<i64: 8, 128>}]} {
    %c0_i32 = arith.constant 0 : i32
    %0 = arith.cmpi eq, %arg2, %c0_i32 : i32
    %1 = arith.extui %0 : i1 to i32
    %c0_i32_0 = arith.constant 0 : i32
    %2 = arith.cmpi ne, %1, %c0_i32_0 : i32
    scf.if %2 {
      %cst_10 = arith.constant 0.000000e+00 : f32
      %13 = vector.broadcast %cst_10 : f32 to vector<8x128xf32>
      %c0_11 = arith.constant 0 : index
      %c0_12 = arith.constant 0 : index
      %14 = vector.load %arg7[%c0_11, %c0_12] : memref<8x128xf32, #tpu.memory_space<vmem>>, vector<8x128xf32>
      tpu.vector_store %arg7[%c0_11, %c0_12], %13 {strides = array<i32>} : memref<8x128xf32, #tpu.memory_space<vmem>>, vector<8x128xf32>,
    } else {
    }
    %c0 = arith.constant 0 : index
    %c0_1 = arith.constant 0 : index
    %3 = vector.load %arg7[%c0, %c0_1] : memref<8x128xf32, #tpu.memory_space<vmem>>, vector<8x128xf32>
    %c0_2 = arith.constant 0 : index
    %c0_3 = arith.constant 0 : index
    %4 = vector.load %arg4[%c0_2, %c0_3] : memref<8x128xf32, #tpu.memory_space<vmem>>, vector<8x128xf32>
    %5 = arith.truncf %4 : vector<8x128xf32> to vector<8x128xbf16>
    %c0_4 = arith.constant 0 : index
    %c0_5 = arith.constant 0 : index
    %6 = vector.load %arg5[%c0_4, %c0_5] : memref<128x128xbf16, #tpu.memory_space<vmem>>, vector<128x128xbf16>
    %cst = arith.constant dense<0.000000e+00> : vector<8x128xf32>
    %7 = tpu.matmul %5, %6, %cst {dimension_numbers = #tpu.dot_dimension_numbers<[1], [1], [0], [0], [0, 0, 1, 0], [], []>} : vector<8x128xbf16>, vector<128x128xbf16>, vector<8x128xf32> -> vector<8x128xf32>
    %8 = arith.addf %3, %7 : vector<8x128xf32>
    %c0_6 = arith.constant 0 : index
    %c0_7 = arith.constant 0 : index
    %9 = vector.load %arg7[%c0_6, %c0_7] : memref<8x128xf32, #tpu.memory_space<vmem>>, vector<8x128xf32>
    tpu.vector_store %arg7[%c0_6, %c0_7], %8 {strides = array<i32>} : memref<8x128xf32, #tpu.memory_space<vmem>>, vector<8x128xf32>,
    %c0_i32_8 = arith.constant 0 : i32
    %10 = arith.cmpi eq, %arg2, %c0_i32_8 : i32
    %11 = arith.extui %10 : i1 to i32
    %c0_i32_9 = arith.constant 0 : i32
    %12 = arith.cmpi ne, %11, %c0_i32_9 : i32
    scf.if %12 {
      %c0_10 = arith.constant 0 : index
      %c0_11 = arith.constant 0 : index
      %13 = vector.load %arg7[%c0_10, %c0_11] : memref<8x128xf32, #tpu.memory_space<vmem>>, vector<8x128xf32>
      %c0_12 = arith.constant 0 : index
      %c0_13 = arith.constant 0 : index
      %14 = memref.load %arg3[%c0_12, %c0_13] : memref<1x1xf32, #tpu.memory_space<smem>>
      %15 = vector.broadcast %14 : f32 to vector<8x128xf32>
      %16 = arith.mulf %13, %15 : vector<8x128xf32>
      %c0_14 = arith.constant 0 : index
      %c0_15 = arith.constant 0 : index
      %17 = vector.load %arg6[%c0_14, %c0_15] : memref<1x128xf32, #tpu.memory_space<vmem>>, vector<1x128xf32>
      %18 = vector.broadcast %17 : vector<1x128xf32> to vector<8x128xf32>
      %19 = arith.addf %16, %18 : vector<8x128xf32>
      %cst_16 = arith.constant 0.000000e+00 : f32
      %20 = vector.broadcast %cst_16 : f32 to vector<8x128xf32>
      %21 = arith.maximumf %19, %20 : vector<8x128xf32>
      %c0_17 = arith.constant 0 : index
      %c0_18 = arith.constant 0 : index
      %22 = vector.load %arg7[%c0_17, %c0_18] : memref<8x128xf32, #tpu.memory_space<vmem>>, vector<8x128xf32>
      tpu.vector_store %arg7[%c0_17, %c0_18], %21 {strides = array<i32>} : memref<8x128xf32, #tpu.memory_space<vmem>>, vector<8x128xf32>,
    } else {
    }
    return
  }
  func.func @transform_0(%arg0: i32, %arg1: i32, %arg2: i32) -> (i32, i32) {
    %c0_i32 = arith.constant 0 : i32
    %c0_i32_0 = arith.constant 0 : i32
    %c0_i32_1 = arith.constant 0 : i32
    return %c0_i32, %c0_i32_0 : i32, i32
  }
  func.func @transform_1(%arg0: i32, %arg1: i32, %arg2: i32) -> (i32, i32) {
    %c0_i32 = arith.constant 0 : i32
    return %arg0, %arg2 : i32, i32
  }
  func.func @transform_2(%arg0: i32, %arg1: i32, %arg2: i32) -> (i32, i32) {
    %c0_i32 = arith.constant 0 : i32
    return %arg1, %arg2 : i32, i32
  }
  func.func @transform_3(%arg0: i32, %arg1: i32, %arg2: i32) -> (i32, i32) {
    %c0_i32 = arith.constant 0 : i32
    %c0_i32_0 = arith.constant 0 : i32
    return %c0_i32, %arg1 : i32, i32
  }
  func.func @transform_4(%arg0: i32, %arg1: i32, %arg2: i32) -> (i32, i32) {
    %c0_i32 = arith.constant 0 : i32
    return %arg0, %arg1 : i32, i32
  }
}

</mosaic_0001>

<llo_original>
// kernel: fcnet_forward.1
$region0: #{fcnet_forward.1}
  #allocation0 [shape = 'u32[]', space=smem, size = 0x4, offset = 0x4, fixed_abs, tag = 'smem constant byte address 0x4 - core index']
  #allocation1 [shape = 'u32[72,128]{1,0:T(1,128)}', space=vmem, size = 0x9000, scoped, tag = 'internal scratch']
  #allocation2 [shape = 'f32[1,1]{1,0:T(1,128)S(6)}', space=smem, size = 0x200, scoped, tag = 'scoped memory for fcnet_forward.1']
  %s0 = inlined_call_operand.<no memory space> [shape: f32[1,1], index: 0, kind: input, shape index: {}]
  %s1 = inlined_call_operand.vmem [shape: f32[8,128], index: 1, kind: input, shape index: {}]
  %s2 = inlined_call_operand.vmem [shape: bf16[128,128], index: 2, kind: input, shape index: {}]
  %s3 = inlined_call_operand.vmem [shape: f32[1,128], index: 3, kind: input, shape index: {}]
  %s4 = inlined_call_operand.hbm [shape: f32[8,128], index: 4, kind: output, shape index: {}]
  %s5 = sld [smem:[#allocation0]]
  $region34: #{fcnet_forward.1} parent=0
    _
  %s7 = ssub.s32 1, %s5
  %s8 = scalar_select 0, %s7, %s5
  %9 = sst [smem:[#allocation2]] %s0
  $region1: #{fcnet_forward.1} parent=0
    #allocation3 [shape = 'u8[4096]{0}', space=vmem, size = 0x1000, scoped, tag = 'output window, operand 0, single buffered']
    #allocation4 [shape = 's32[1]{0}', space=sflag, size = 0x4, scoped, tag = 'scoped memory for fcnet_forward.1']
    %10 = vsyncpa [#allocation4], 0
    // Predicated region
    $region2: #{fcnet_forward.1} parent=1 // pred_check
      _
    $region3: #{fcnet_forward.1} parent=1 // pred_check_branch
      %12 = sbr.rel (0) target = $region5
    $region4: #{fcnet_forward.1} parent=1 // pred_region
      _
    $region5: #{fcnet_forward.1} parent=1 // pred_fallthru
      _
    // Predicated region
    $region6: #{fcnet_forward.1} parent=1 // pred_check
      _
    $region7: #{fcnet_forward.1} parent=1 // pred_check_branch
      %14 = sbr.rel (0) target = $region9
    $region8: #{fcnet_forward.1} parent=1 // pred_region
      _
    $region9: #{fcnet_forward.1} parent=1 // pred_fallthru
      _
    // Predicated region
    $region10: #{fcnet_forward.1} parent=1 // pred_check
      _
    $region11: #{fcnet_forward.1} parent=1 // pred_check_branch
      %16 = sbr.rel (0) target = $region13
    $region12: #{fcnet_forward.1} parent=1 // pred_region
      _
    $region13: #{fcnet_forward.1} parent=1 // pred_fallthru
      _
    // Predicated region
    $region14: #{fcnet_forward.1} parent=1 // pred_check
      _
    $region15: #{fcnet_forward.1} parent=1 // pred_check_branch
      %18 = sbr.rel (0) target = $region17
    $region16: #{fcnet_forward.1} parent=1 // pred_region
      _
    $region17: #{fcnet_forward.1} parent=1 // pred_fallthru
      _
    %p19 = scmp.eq.s32.totalorder 0, 0
    // Predicated region
    $region18: #{fcnet_forward.1} parent=1 // pred_check
      %p20 = pneg %p19
    $region19: #{fcnet_forward.1} parent=1 // pred_check_branch
      %22 = sbr.rel (%p20) target = $region21
    $region20: #{fcnet_forward.1} parent=1 // pred_region
      %23 = vst [vmem:[#allocation3] sm:$0xff] 0.0
    $region21: #{fcnet_forward.1} parent=1 // pred_fallthru
      _
    %v24 = vld [vmem:[#allocation3] sm:$0xff]
    %v25 = vld [vmem:[%s1] sm:$0xff]
    %v26 = vpack.c.bf16 %v25, %v25
    %v27 = vld [vmem:[%s2] sm:$0xf]
    %v28 = vld [vmem:[%s2 + $0x4] sm:$0xf]
    %v29 = vld [vmem:[%s2 + $0x8] sm:$0xf]
    %v30 = vld [vmem:[%s2 + $0xc] sm:$0xf]
    %v31 = vld [vmem:[%s2 + $0x10] sm:$0xf]
    %v32 = vld [vmem:[%s2 + $0x14] sm:$0xf]
    %v33 = vld [vmem:[%s2 + $0x18] sm:$0xf]
    %v34 = vld [vmem:[%s2 + $0x1c] sm:$0xf]
    %v35 = vld [vmem:[%s2 + $0x20] sm:$0xf]
    %v36 = vld [vmem:[%s2 + $0x24] sm:$0xf]
    %v37 = vld [vmem:[%s2 + $0x28] sm:$0xf]
    %v38 = vld [vmem:[%s2 + $0x2c] sm:$0xf]
    %v39 = vld [vmem:[%s2 + $0x30] sm:$0xf]
    %v40 = vld [vmem:[%s2 + $0x34] sm:$0xf]
    %v41 = vld [vmem:[%s2 + $0x38] sm:$0xf]
    %v42 = vld [vmem:[%s2 + $0x3c] sm:$0xf]
    %v59 = vunpack.c.l.b16 %v27
    %v60 = vunpack.c.l.b16 %v28
    %v61 = vunpack.c.l.b16 %v29
    %v62 = vunpack.c.l.b16 %v30
    %v63 = vunpack.c.l.b16 %v31
    %v64 = vunpack.c.l.b16 %v32
    %v65 = vunpack.c.l.b16 %v33
    %v66 = vunpack.c.l.b16 %v34
    %v67 = vunpack.c.l.b16 %v35
    %v68 = vunpack.c.l.b16 %v36
    %v69 = vunpack.c.l.b16 %v37
    %v70 = vunpack.c.l.b16 %v38
    %v71 = vunpack.c.l.b16 %v39
    %v72 = vunpack.c.l.b16 %v40
    %v73 = vunpack.c.l.b16 %v41
    %v74 = vunpack.c.l.b16 %v42
    %v75 = vpack.c.b16 %v60, %v59
    %v76 = vpack.c.b16 %v62, %v61
    %v77 = vpack.c.b16 %v64, %v63
    %v78 = vpack.c.b16 %v66, %v65
    %v79 = vpack.c.b16 %v68, %v67
    %v80 = vpack.c.b16 %v70, %v69
    %v81 = vpack.c.b16 %v72, %v71
    %v82 = vpack.c.b16 %v74, %v73
    %91 = vmatpush.bf16.xpose.msra.mxu0 %v82
    %92 = vmatpush.bf16.xpose.msra.mxu0 %v81
    %93 = vmatpush.bf16.xpose.msra.mxu0 %v80
    %94 = vmatpush.bf16.xpose.msra.mxu0 %v79
    %95 = vmatpush.bf16.xpose.msra.mxu0 %v78
    %96 = vmatpush.bf16.xpose.msra.mxu0 %v77
    %97 = vmatpush.bf16.xpose.msra.mxu0 %v76
    %98 = vmatpush.bf16.xpose.msra.mxu0 %v75
    %99 = vmatmul.bf16.gmra.mxu0 %v26
    %v100 = vpop.f32.mrf.mxu0
    %v101 = vadd.f32 0.0, %v100
    %v102 = vpop.f32.mrf.mxu0
    %103 = vdwg.mxu0
    %v104 = vadd.f32 %v24, %v101
    %105 = vst [vmem:[#allocation3] sm:$0xff] %v104
    // Predicated region
    $region22: #{fcnet_forward.1} parent=1 // pred_check
      %p106 = pneg %p19
    $region23: #{fcnet_forward.1} parent=1 // pred_check_branch
      %108 = sbr.rel (%p106) target = $region25
    $region24: #{fcnet_forward.1} parent=1 // pred_region
      %v109 = vld [vmem:[#allocation3] sm:$0xff]
      %s110 = sld [smem:[#allocation2]]
      %v111 = vstv %s110
      %v112 = vmul.f32 %v109, %v111
      %v113 = vld [vmem:[%s3] sm:$0x1]
      %v115 = vperm.slane %v113, 0
      %v117 = vadd.f32 %v112, %v115
      %v118 = vmax.f32 %v117, 0.0
      %119 = vst [vmem:[#allocation3] sm:$0xff] %v118
    $region25: #{fcnet_forward.1} parent=1 // pred_fallthru
      _
    // Predicated region
    $region26: #{fcnet_forward.1} parent=1 // pred_check
      _
    $region27: #{fcnet_forward.1} parent=1 // pred_check_branch
      %121 = sbr.rel (0) target = $region29
    $region28: #{fcnet_forward.1} parent=1 // pred_region
      %123 = vsyncadd [#allocation4], 0
      %s125 = sshll.u32 [#allocation3], 4
      %s126 = int_to_ptr.vmem [resolvable:$true] %s125
      %s127 = sshll.u32 %s4, 4
      %s128 = int_to_ptr.hbm [resolvable:$true] %s127
      %130 = dma.vmem_to_hbm [thread:$0]  %s126, 128, %s128, [#allocation4]
    $region29: #{fcnet_forward.1} parent=1 // pred_fallthru
      _
    // Predicated region
    $region30: #{fcnet_forward.1} parent=1 // pred_check
      _
    $region31: #{fcnet_forward.1} parent=1 // pred_check_branch
      %132 = sbr.rel (0) target = $region33
    $region32: #{fcnet_forward.1} parent=1 // pred_region
      %134 = dma.done [#allocation4], 128
    $region33: #{fcnet_forward.1} parent=1 // pred_fallthru
      _
    %135 = vsyncpa [#allocation4], 1

</llo_original>
